<compile_context>
chip_gen: v5e
topology: v5e:2x2
jax: 0.10.0
libtpu: 0.0.40
codegen_flags: <defaults>
</compile_context>

<pallas_src>
import functools

import jax
import jax.numpy as jnp
import numpy as np
from jax.experimental import pallas as pl
from jax.experimental.pallas import tpu as pltpu

IN_DIM = 2        # dim_input of FF (cat(X, Y))
HID = 50          # dim_hidden
PAD = 128         # lane padding for hidden features
XW = 8            # lane width of the packed (x, y) input rows
LN_EPS = 1e-5     # torch.nn.LayerNorm default eps
TILE_CAP = 2048   # max rows per grid step (footprint ~5 MiB, fine on v5e/v6e/v7x)


def _round_up(n, m):
    return ((n + m - 1) // m) * m


def _mine_fused_kernel(x_ref, stats_ref,
                       w1_ref, b1_ref, g1_ref, be1_ref,
                       w2_ref, b2_ref, g2_ref, be2_ref,
                       w3_ref,
                       out_ref,
                       *, n_joint, tile_b, half_tiles):
    """T = Softplus(L3(tanh(LN2(L2(tanh(LN1(L1(x)))))))), fused partial sums."""
    inv_hid = 1.0 / HID

    x = x_ref[...]                                   # (tile_b, XW); cols 0,1 real
    x0 = x[:, 0:1]
    x1 = x[:, 1:2]

    # Layer 1 on the VPU: only 2 input features -> two broadcast multiply-adds.
    h1 = x0 * w1_ref[0:1, :] + x1 * w1_ref[1:2, :] + b1_ref[...]     # (tile_b, PAD)

    # LN1 with analytic statistics: h1 is affine in (x0, x1), so mean and mean-of-square
    # over the HID true features are quadratic in (x0, x1) with 9 precomputed scalars.
    # No cross-lane reductions needed.  Scalars live in lanes 0..8 of the stats vector.
    st = stats_ref[...]                              # (1, PAD)
    mean1 = (x0 * st[:, 0:1] + x1 * st[:, 1:2] + st[:, 2:3]) * inv_hid
    msq1 = (x0 * x0 * st[:, 3:4] + x1 * x1 * st[:, 4:5]
            + 2.0 * x0 * x1 * st[:, 5:6]
            + 2.0 * x0 * st[:, 6:7] + 2.0 * x1 * st[:, 7:8]
            + st[:, 8:9]) * inv_hid
    var1 = msq1 - mean1 * mean1
    # Padded lanes: w1/b1 are zero-padded so h1 = 0 there, and gamma = beta = 0 there,
    # so LN output (and tanh) stays exactly zero on padded lanes.
    h1 = jnp.tanh((h1 - mean1) * jax.lax.rsqrt(var1 + LN_EPS)
                  * g1_ref[...] + be1_ref[...])

    # Layer 2 on the MXU: bf16 operands, f32 accumulation.
    h2 = jnp.dot(h1.astype(jnp.bfloat16), w2_ref[...],
                 preferred_element_type=jnp.float32) + b2_ref[...]

    # LN2: one-pass stats, unmasked sums are exact because padded lanes of h2 are zero
    # (w2/b2 zero-padded).
    mean2 = jnp.sum(h2, axis=-1, keepdims=True) * inv_hid
    msq2 = jnp.sum(h2 * h2, axis=-1, keepdims=True) * inv_hid
    var2 = msq2 - mean2 * mean2
    h2 = jnp.tanh((h2 - mean2) * jax.lax.rsqrt(var2 + LN_EPS)
                  * g2_ref[...] + be2_ref[...])

    # Layer 3: single output unit -> VPU multiply + lane reduction; b3 is in stats lane 9.
    z = jnp.sum(h2 * w3_ref[...], axis=-1, keepdims=True) + st[:, 9:10]   # (tile_b, 1)

    # Softplus T(z) and exp(T(z)) = 1 + exp(z), sharing exp(-|z|).
    e = jnp.exp(-jnp.abs(z))
    t = jnp.maximum(z, 0.0) + jnp.log(1.0 + e)                 # softplus(z)
    exp_z = jnp.where(z >= 0.0, pl.reciprocal(e), e)           # exp(z)
    exp_t = 1.0 + exp_z                                        # exp(softplus(z))

    # Per-tile branch: first half_tiles grid steps hold the joint batch, the rest the
    # shuffled-marginal batch.  Each half is padded separately to a multiple of tile_b.
    i = pl.program_id(0)
    is_joint = i < half_tiles
    local_tile = jnp.where(is_joint, i, i - half_tiles)
    row = (local_tile * tile_b
           + jax.lax.broadcasted_iota(jnp.int32, (tile_b, 1), 0))
    valid = row < n_joint

    contrib = jnp.where(is_joint, t, exp_t)
    tile_sum = jnp.sum(jnp.where(valid, contrib, 0.0))

    out_ref[...] = jnp.full((1, 1, PAD), tile_sum, dtype=jnp.float32)


@functools.partial(jax.jit, static_argnames=("n_joint",))
def _mine_sums(xj, xm, params, *, n_joint):
    """xj, xm: (n_joint, 2) f32 -> (sum T over joint rows, sum exp(T) over marginal rows)."""
    stats, w1, b1, g1, be1, w2, b2, g2, be2, w3 = params

    tile_b = min(TILE_CAP, _round_up(n_joint, 8))
    half_pad = _round_up(n_joint, tile_b)
    half_tiles = half_pad // tile_b
    num_tiles = 2 * half_tiles                      # >= 2: both v7x TCs get work

    # True 2-column input, padded to 8 lanes; joint and marginal halves padded
    # separately to a multiple of tile_b rows.
    x_pad = jnp.zeros((2 * half_pad, XW), jnp.float32)
    x_pad = x_pad.at[:n_joint, :IN_DIM].set(xj)
    x_pad = x_pad.at[half_pad:half_pad + n_joint, :IN_DIM].set(xm)

    def vec_spec():
        return pl.BlockSpec((1, PAD), lambda i: (0, 0))

    kernel = functools.partial(_mine_fused_kernel, n_joint=n_joint,
                               tile_b=tile_b, half_tiles=half_tiles)

    out = pl.pallas_call(
        kernel,
        out_shape=jax.ShapeDtypeStruct((num_tiles, 1, PAD), jnp.float32),
        grid=(num_tiles,),
        in_specs=[
            pl.BlockSpec((tile_b, XW), lambda i: (i, 0)),   # x   (streamed)
            vec_spec(),                                     # stats (LN1 scalars + b3)
            pl.BlockSpec((XW, PAD), lambda i: (0, 0)),      # w1 rows     (resident)
            vec_spec(), vec_spec(), vec_spec(),             # b1, ln1 gamma/beta
            pl.BlockSpec((PAD, PAD), lambda i: (0, 0)),     # w2 bf16     (resident)
            vec_spec(), vec_spec(), vec_spec(),             # b2, ln2 gamma/beta
            vec_spec(),                                     # w3 as a row vector
        ],
        out_specs=pl.BlockSpec((1, 1, PAD), lambda i: (i, 0, 0)),
        compiler_params=pltpu.CompilerParams(
            dimension_semantics=("parallel",)),
    )(x_pad, stats, w1, b1, g1, be1, w2, b2, g2, be2, w3)

    col = out[:, 0, 0]
    return jnp.sum(col[:half_tiles]), jnp.sum(col[half_tiles:])


def init_mine_params(key):
    """Deterministic synthetic init of T_xy weights, pre-padded / pre-packed for the kernel."""
    ks = jax.random.split(key, 6)

    def pad_vec(v):
        return jnp.zeros((1, PAD), jnp.float32).at[0, :v.shape[0]].set(v)

    w1 = jax.random.normal(ks[0], (IN_DIM, HID), jnp.float32) / jnp.sqrt(IN_DIM)
    b1 = 0.1 * jax.random.normal(ks[1], (HID,), jnp.float32)
    w2 = jax.random.normal(ks[2], (HID, HID), jnp.float32) / jnp.sqrt(HID)
    b2 = 0.1 * jax.random.normal(ks[3], (HID,), jnp.float32)
    w3 = jax.random.normal(ks[4], (HID,), jnp.float32) / jnp.sqrt(HID)
    b3 = 0.1 * jax.random.normal(ks[5], (1,), jnp.float32)

    g1 = jnp.ones((HID,), jnp.float32)
    be1 = jnp.zeros((HID,), jnp.float32)
    g2 = jnp.ones((HID,), jnp.float32)
    be2 = jnp.zeros((HID,), jnp.float32)

    w1_pad = jnp.zeros((XW, PAD), jnp.float32).at[:IN_DIM, :HID].set(w1)
    # Layer-2 weights live in VMEM as bf16 (MXU operands); f32 accumulation in-kernel.
    w2_pad = (jnp.zeros((PAD, PAD), jnp.float32).at[:HID, :HID].set(w2)
              .astype(jnp.bfloat16))

    # Analytic LN1 statistics (h1 = x0*w1[0] + x1*w1[1] + b1) + b3, packed into lanes 0..9.
    stats = jnp.zeros((1, PAD), jnp.float32)
    stats = stats.at[0, 0].set(jnp.sum(w1[0]))
    stats = stats.at[0, 1].set(jnp.sum(w1[1]))
    stats = stats.at[0, 2].set(jnp.sum(b1))
    stats = stats.at[0, 3].set(jnp.sum(w1[0] * w1[0]))
    stats = stats.at[0, 4].set(jnp.sum(w1[1] * w1[1]))
    stats = stats.at[0, 5].set(jnp.sum(w1[0] * w1[1]))
    stats = stats.at[0, 6].set(jnp.sum(w1[0] * b1))
    stats = stats.at[0, 7].set(jnp.sum(w1[1] * b1))
    stats = stats.at[0, 8].set(jnp.sum(b1 * b1))
    stats = stats.at[0, 9].set(b3[0])

    return (stats, w1_pad, pad_vec(b1), pad_vec(g1), pad_vec(be1),
            w2_pad, pad_vec(b2), pad_vec(g2), pad_vec(be2), pad_vec(w3))


def mine_forward(params, X, Y, perm_key, ema=None, alpha=0.95):
    """Reproduces MINE.forward(X, Y).  X, Y: (B, 1) f32.  Returns (output, new ema)."""
    B = X.shape[0]
    kx, ky = jax.random.split(perm_key)
    perm_x = jax.random.permutation(kx, B)
    perm_y = jax.random.permutation(ky, B)

    xy_joint = jnp.concatenate([X, Y], axis=-1)                   # (B, 2)
    xy_marg = jnp.concatenate([X[perm_x], Y[perm_y]], axis=-1)    # (B, 2)

    sum_t_joint, sum_expt_marg = _mine_sums(xy_joint, xy_marg, params, n_joint=B)
    T_joint = sum_t_joint / B
    exp_T_marginal = sum_expt_marg / B

    # self.ema starts at +inf -> first call sets ema = exp_T_marginal
    ema_new = exp_T_marginal if ema is None else alpha * ema + (1.0 - alpha) * exp_T_marginal

    I_estimate = T_joint - jnp.log(exp_T_marginal)
    gradient_estimate = T_joint - exp_T_marginal / ema_new
    # Numerically: -I_estimate + grad_est.detach() - grad_est == -I_estimate
    out = -I_estimate + gradient_estimate - gradient_estimate
    return out, ema_new


def _reference_forward(params, X, Y, perm_key, alpha=0.95):
    """Pure-jnp f32 reference of MINE.forward for validation."""
    stats, w1p, b1p, g1p, be1p, w2p, b2p, g2p, be2p, w3p = params
    w1 = w1p[:IN_DIM, :HID]
    b1 = b1p[0, :HID]
    g1, be1 = g1p[0, :HID], be1p[0, :HID]
    w2 = w2p[:HID, :HID].astype(jnp.float32)
    b2 = b2p[0, :HID]
    g2, be2 = g2p[0, :HID], be2p[0, :HID]
    w3 = w3p[0, :HID]
    b3 = stats[0, 9]

    def ln(h):
        m = jnp.mean(h, axis=-1, keepdims=True)
        v = jnp.var(h, axis=-1, keepdims=True)
        return (h - m) / jnp.sqrt(v + LN_EPS)

    def T(x):
        h = jnp.tanh(ln(x @ w1 + b1) * g1 + be1)
        h = jnp.tanh(ln(h @ w2 + b2) * g2 + be2)
        z = h @ w3 + b3
        return jnp.logaddexp(0.0, z)

    B = X.shape[0]
    kx, ky = jax.random.split(perm_key)
    perm_x = jax.random.permutation(kx, B)
    perm_y = jax.random.permutation(ky, B)
    xy_joint = jnp.concatenate([X, Y], axis=-1)
    xy_marg = jnp.concatenate([X[perm_x], Y[perm_y]], axis=-1)

    T_joint = jnp.mean(T(xy_joint))
    exp_T_marginal = jnp.mean(jnp.exp(T(xy_marg)))
    ema_new = exp_T_marginal
    I_estimate = T_joint - jnp.log(exp_T_marginal)
    gradient_estimate = T_joint - exp_T_marginal / ema_new
    return -I_estimate + gradient_estimate - gradient_estimate, ema_new


if __name__ == "__main__":
    key = jax.random.PRNGKey(0)
    k_param, k_x, k_y, k_perm = jax.random.split(key, 4)

    params = init_mine_params(k_param)

    B = 8
    X = jax.random.normal(k_x, (B, 1), jnp.float32)
    Y = 0.7 * X + 0.3 * jax.random.normal(k_y, (B, 1), jnp.float32)

    out, ema = mine_forward(params, X, Y, k_perm)
    out = jax.block_until_ready(out)
    ema = jax.block_until_ready(ema)

    out_ref, ema_ref = _reference_forward(params, X, Y, k_perm)
    out_ref = jax.block_until_ready(out_ref)
    ema_ref = jax.block_until_ready(ema_ref)

    ok = (np.allclose(np.asarray(out), np.asarray(out_ref), rtol=5e-2, atol=5e-2)
          and np.allclose(np.asarray(ema), np.asarray(ema_ref), rtol=5e-2, atol=5e-2))
    if not ok:
        raise AssertionError(
            f"kernel mismatch: out={float(out)} vs {float(out_ref)}, "
            f"ema={float(ema)} vs {float(ema_ref)}")
    print("KERNEL_OK")
</pallas_src>

<mosaic_0001>
module attributes {stable_mosaic.version = 11 : i64} {
  func.func @_mine_fused_kernel(%arg0: i32, %arg1: memref<8x8xf32, #tpu.memory_space<vmem>>, %arg2: memref<1x128xf32, #tpu.memory_space<vmem>>, %arg3: memref<8x128xf32, #tpu.memory_space<vmem>>, %arg4: memref<1x128xf32, #tpu.memory_space<vmem>>, %arg5: memref<1x128xf32, #tpu.memory_space<vmem>>, %arg6: memref<1x128xf32, #tpu.memory_space<vmem>>, %arg7: memref<128x128xbf16, #tpu.memory_space<vmem>>, %arg8: memref<1x128xf32, #tpu.memory_space<vmem>>, %arg9: memref<1x128xf32, #tpu.memory_space<vmem>>, %arg10: memref<1x128xf32, #tpu.memory_space<vmem>>, %arg11: memref<1x128xf32, #tpu.memory_space<vmem>>, %arg12: memref<1x1x128xf32, #tpu.memory_space<vmem>>) attributes {dimension_semantics = [#tpu.dimension_semantics<parallel>], iteration_bounds = array<i64: 2>, scalar_prefetch = 0 : i64, scratch_operands = 0 : i64, tpu.core_type = #tpu.core_type<tc>, window_params = [{transform_indices = @transform_0, window_bounds = array<i64: 8, 8>}, {pipeline_mode = #tpu.pipeline_mode<synchronous>, transform_indices = @transform_1, window_bounds = array<i64: 1, 128>}, {pipeline_mode = #tpu.pipeline_mode<synchronous>, transform_indices = @transform_2, window_bounds = array<i64: 8, 128>}, {pipeline_mode = #tpu.pipeline_mode<synchronous>, transform_indices = @transform_3, window_bounds = array<i64: 1, 128>}, {pipeline_mode = #tpu.pipeline_mode<synchronous>, transform_indices = @transform_4, window_bounds = array<i64: 1, 128>}, {pipeline_mode = #tpu.pipeline_mode<synchronous>, transform_indices = @transform_5, window_bounds = array<i64: 1, 128>}, {pipeline_mode = #tpu.pipeline_mode<synchronous>, transform_indices = @transform_6, window_bounds = array<i64: 128, 128>}, {pipeline_mode = #tpu.pipeline_mode<synchronous>, transform_indices = @transform_7, window_bounds = array<i64: 1, 128>}, {pipeline_mode = #tpu.pipeline_mode<synchronous>, transform_indices = @transform_8, window_bounds = array<i64: 1, 128>}, {pipeline_mode = #tpu.pipeline_mode<synchronous>, transform_indices = @transform_9, window_bounds = array<i64: 1, 128>}, {pipeline_mode = #tpu.pipeline_mode<synchronous>, transform_indices = @transform_10, window_bounds = array<i64: 1, 128>}, {transform_indices = @transform_11, window_bounds = array<i64: 1, 1, 128>}]} {
    %c0 = arith.constant 0 : index
    %c0_0 = arith.constant 0 : index
    %0 = vector.load %arg1[%c0, %c0_0] : memref<8x8xf32, #tpu.memory_space<vmem>>, vector<8x8xf32>
    %1 = vector.extract_strided_slice %0 {offsets = [0, 0], sizes = [8, 1], strides = [1, 1]} : vector<8x8xf32> to vector<8x1xf32>
    %2 = vector.extract_strided_slice %0 {offsets = [0, 1], sizes = [8, 1], strides = [1, 1]} : vector<8x8xf32> to vector<8x1xf32>
    %c0_1 = arith.constant 0 : index
    %c0_2 = arith.constant 0 : index
    %3 = vector.load %arg3[%c0_1, %c0_2] : memref<8x128xf32, #tpu.memory_space<vmem>>, vector<1x128xf32>
    %4 = vector.broadcast %1 : vector<8x1xf32> to vector<8x128xf32>
    %5 = vector.broadcast %3 : vector<1x128xf32> to vector<8x128xf32>
    %6 = arith.mulf %4, %5 : vector<8x128xf32>
    %c1 = arith.constant 1 : index
    %c0_3 = arith.constant 0 : index
    %7 = vector.load %arg3[%c1, %c0_3] : memref<8x128xf32, #tpu.memory_space<vmem>>, vector<1x128xf32>
    %8 = vector.broadcast %2 : vector<8x1xf32> to vector<8x128xf32>
    %9 = vector.broadcast %7 : vector<1x128xf32> to vector<8x128xf32>
    %10 = arith.mulf %8, %9 : vector<8x128xf32>
    %11 = arith.addf %6, %10 : vector<8x128xf32>
    %c0_4 = arith.constant 0 : index
    %c0_5 = arith.constant 0 : index
    %12 = vector.load %arg4[%c0_4, %c0_5] : memref<1x128xf32, #tpu.memory_space<vmem>>, vector<1x128xf32>
    %13 = vector.broadcast %12 : vector<1x128xf32> to vector<8x128xf32>
    %14 = arith.addf %11, %13 : vector<8x128xf32>
    %c0_6 = arith.constant 0 : index
    %c0_7 = arith.constant 0 : index
    %15 = vector.load %arg2[%c0_6, %c0_7] : memref<1x128xf32, #tpu.memory_space<vmem>>, vector<1x128xf32>
    %16 = vector.extract_strided_slice %15 {offsets = [0, 0], sizes = [1, 1], strides = [1, 1]} : vector<1x128xf32> to vector<1x1xf32>
    %17 = vector.broadcast %16 : vector<1x1xf32> to vector<8x1xf32>
    %18 = arith.mulf %1, %17 : vector<8x1xf32>
    %19 = vector.extract_strided_slice %15 {offsets = [0, 1], sizes = [1, 1], strides = [1, 1]} : vector<1x128xf32> to vector<1x1xf32>
    %20 = vector.broadcast %19 : vector<1x1xf32> to vector<8x1xf32>
    %21 = arith.mulf %2, %20 : vector<8x1xf32>
    %22 = arith.addf %18, %21 : vector<8x1xf32>
    %23 = vector.extract_strided_slice %15 {offsets = [0, 2], sizes = [1, 1], strides = [1, 1]} : vector<1x128xf32> to vector<1x1xf32>
    %24 = vector.broadcast %23 : vector<1x1xf32> to vector<8x1xf32>
    %25 = arith.addf %22, %24 : vector<8x1xf32>
    %cst = arith.constant 2.000000e-02 : f32
    %26 = vector.broadcast %cst : f32 to vector<8x1xf32>
    %27 = arith.mulf %25, %26 : vector<8x1xf32>
    %28 = arith.mulf %1, %1 : vector<8x1xf32>
    %29 = vector.extract_strided_slice %15 {offsets = [0, 3], sizes = [1, 1], strides = [1, 1]} : vector<1x128xf32> to vector<1x1xf32>
    %30 = vector.broadcast %29 : vector<1x1xf32> to vector<8x1xf32>
    %31 = arith.mulf %28, %30 : vector<8x1xf32>
    %32 = arith.mulf %2, %2 : vector<8x1xf32>
    %33 = vector.extract_strided_slice %15 {offsets = [0, 4], sizes = [1, 1], strides = [1, 1]} : vector<1x128xf32> to vector<1x1xf32>
    %34 = vector.broadcast %33 : vector<1x1xf32> to vector<8x1xf32>
    %35 = arith.mulf %32, %34 : vector<8x1xf32>
    %36 = arith.addf %31, %35 : vector<8x1xf32>
    %cst_8 = arith.constant 2.000000e+00 : f32
    %37 = vector.broadcast %cst_8 : f32 to vector<8x1xf32>
    %38 = arith.mulf %37, %1 : vector<8x1xf32>
    %39 = arith.mulf %38, %2 : vector<8x1xf32>
    %40 = vector.extract_strided_slice %15 {offsets = [0, 5], sizes = [1, 1], strides = [1, 1]} : vector<1x128xf32> to vector<1x1xf32>
    %41 = vector.broadcast %40 : vector<1x1xf32> to vector<8x1xf32>
    %42 = arith.mulf %39, %41 : vector<8x1xf32>
    %43 = arith.addf %36, %42 : vector<8x1xf32>
    %cst_9 = arith.constant 2.000000e+00 : f32
    %44 = vector.broadcast %cst_9 : f32 to vector<8x1xf32>
    %45 = arith.mulf %44, %1 : vector<8x1xf32>
    %46 = vector.extract_strided_slice %15 {offsets = [0, 6], sizes = [1, 1], strides = [1, 1]} : vector<1x128xf32> to vector<1x1xf32>
    %47 = vector.broadcast %46 : vector<1x1xf32> to vector<8x1xf32>
    %48 = arith.mulf %45, %47 : vector<8x1xf32>
    %49 = arith.addf %43, %48 : vector<8x1xf32>
    %cst_10 = arith.constant 2.000000e+00 : f32
    %50 = vector.broadcast %cst_10 : f32 to vector<8x1xf32>
    %51 = arith.mulf %50, %2 : vector<8x1xf32>
    %52 = vector.extract_strided_slice %15 {offsets = [0, 7], sizes = [1, 1], strides = [1, 1]} : vector<1x128xf32> to vector<1x1xf32>
    %53 = vector.broadcast %52 : vector<1x1xf32> to vector<8x1xf32>
    %54 = arith.mulf %51, %53 : vector<8x1xf32>
    %55 = arith.addf %49, %54 : vector<8x1xf32>
    %56 = vector.extract_strided_slice %15 {offsets = [0, 8], sizes = [1, 1], strides = [1, 1]} : vector<1x128xf32> to vector<1x1xf32>
    %57 = vector.broadcast %56 : vector<1x1xf32> to vector<8x1xf32>
    %58 = arith.addf %55, %57 : vector<8x1xf32>
    %cst_11 = arith.constant 2.000000e-02 : f32
    %59 = vector.broadcast %cst_11 : f32 to vector<8x1xf32>
    %60 = arith.mulf %58, %59 : vector<8x1xf32>
    %61 = arith.mulf %27, %27 : vector<8x1xf32>
    %62 = arith.subf %60, %61 : vector<8x1xf32>
    %63 = vector.broadcast %27 : vector<8x1xf32> to vector<8x128xf32>
    %64 = arith.subf %14, %63 : vector<8x128xf32>
    %cst_12 = arith.constant 9.99999974E-6 : f32
    %65 = vector.broadcast %cst_12 : f32 to vector<8x1xf32>
    %66 = arith.addf %62, %65 : vector<8x1xf32>
    %67 = math.rsqrt %66 : vector<8x1xf32>
    %68 = vector.broadcast %67 : vector<8x1xf32> to vector<8x128xf32>
    %69 = arith.mulf %64, %68 : vector<8x128xf32>
    %c0_13 = arith.constant 0 : index
    %c0_14 = arith.constant 0 : index
    %70 = vector.load %arg5[%c0_13, %c0_14] : memref<1x128xf32, #tpu.memory_space<vmem>>, vector<1x128xf32>
    %71 = vector.broadcast %70 : vector<1x128xf32> to vector<8x128xf32>
    %72 = arith.mulf %69, %71 : vector<8x128xf32>
    %c0_15 = arith.constant 0 : index
    %c0_16 = arith.constant 0 : index
    %73 = vector.load %arg6[%c0_15, %c0_16] : memref<1x128xf32, #tpu.memory_space<vmem>>, vector<1x128xf32>
    %74 = vector.broadcast %73 : vector<1x128xf32> to vector<8x128xf32>
    %75 = arith.addf %72, %74 : vector<8x128xf32>
    %76 = math.tanh %75 : vector<8x128xf32>
    %77 = arith.truncf %76 : vector<8x128xf32> to vector<8x128xbf16>
    %c0_17 = arith.constant 0 : index
    %c0_18 = arith.constant 0 : index
    %78 = vector.load %arg7[%c0_17, %c0_18] : memref<128x128xbf16, #tpu.memory_space<vmem>>, vector<128x128xbf16>
    %cst_19 = arith.constant dense<0.000000e+00> : vector<8x128xf32>
    %79 = tpu.matmul %77, %78, %cst_19 {dimension_numbers = #tpu.dot_dimension_numbers<[1], [0], [0], [1], [0, 0, 1, 1], [], []>} : vector<8x128xbf16>, vector<128x128xbf16>, vector<8x128xf32> -> vector<8x128xf32>
    %c0_20 = arith.constant 0 : index
    %c0_21 = arith.constant 0 : index
    %80 = vector.load %arg8[%c0_20, %c0_21] : memref<1x128xf32, #tpu.memory_space<vmem>>, vector<1x128xf32>
    %81 = vector.broadcast %80 : vector<1x128xf32> to vector<8x128xf32>
    %82 = arith.addf %79, %81 : vector<8x128xf32>
    %cst_22 = arith.constant dense<0.000000e+00> : vector<8xf32>
    %83 = vector.multi_reduction <add>, %82, %cst_22 [1] : vector<8x128xf32> to vector<8xf32>
    %84 = vector.shape_cast %83 : vector<8xf32> to vector<8x1xf32>
    %cst_23 = arith.constant 2.000000e-02 : f32
    %85 = vector.broadcast %cst_23 : f32 to vector<8x1xf32>
    %86 = arith.mulf %84, %85 : vector<8x1xf32>
    %87 = arith.mulf %82, %82 : vector<8x128xf32>
    %cst_24 = arith.constant dense<0.000000e+00> : vector<8xf32>
    %88 = vector.multi_reduction <add>, %87, %cst_24 [1] : vector<8x128xf32> to vector<8xf32>
    %89 = vector.shape_cast %88 : vector<8xf32> to vector<8x1xf32>
    %cst_25 = arith.constant 2.000000e-02 : f32
    %90 = vector.broadcast %cst_25 : f32 to vector<8x1xf32>
    %91 = arith.mulf %89, %90 : vector<8x1xf32>
    %92 = arith.mulf %86, %86 : vector<8x1xf32>
    %93 = arith.subf %91, %92 : vector<8x1xf32>
    %94 = vector.broadcast %86 : vector<8x1xf32> to vector<8x128xf32>
    %95 = arith.subf %82, %94 : vector<8x128xf32>
    %cst_26 = arith.constant 9.99999974E-6 : f32
    %96 = vector.broadcast %cst_26 : f32 to vector<8x1xf32>
    %97 = arith.addf %93, %96 : vector<8x1xf32>
    %98 = math.rsqrt %97 : vector<8x1xf32>
    %99 = vector.broadcast %98 : vector<8x1xf32> to vector<8x128xf32>
    %100 = arith.mulf %95, %99 : vector<8x128xf32>
    %c0_27 = arith.constant 0 : index
    %c0_28 = arith.constant 0 : index
    %101 = vector.load %arg9[%c0_27, %c0_28] : memref<1x128xf32, #tpu.memory_space<vmem>>, vector<1x128xf32>
    %102 = vector.broadcast %101 : vector<1x128xf32> to vector<8x128xf32>
    %103 = arith.mulf %100, %102 : vector<8x128xf32>
    %c0_29 = arith.constant 0 : index
    %c0_30 = arith.constant 0 : index
    %104 = vector.load %arg10[%c0_29, %c0_30] : memref<1x128xf32, #tpu.memory_space<vmem>>, vector<1x128xf32>
    %105 = vector.broadcast %104 : vector<1x128xf32> to vector<8x128xf32>
    %106 = arith.addf %103, %105 : vector<8x128xf32>
    %107 = math.tanh %106 : vector<8x128xf32>
    %c0_31 = arith.constant 0 : index
    %c0_32 = arith.constant 0 : index
    %108 = vector.load %arg11[%c0_31, %c0_32] : memref<1x128xf32, #tpu.memory_space<vmem>>, vector<1x128xf32>
    %109 = vector.broadcast %108 : vector<1x128xf32> to vector<8x128xf32>
    %110 = arith.mulf %107, %109 : vector<8x128xf32>
    %cst_33 = arith.constant dense<0.000000e+00> : vector<8xf32>
    %111 = vector.multi_reduction <add>, %110, %cst_33 [1] : vector<8x128xf32> to vector<8xf32>
    %112 = vector.shape_cast %111 : vector<8xf32> to vector<8x1xf32>
    %113 = vector.extract_strided_slice %15 {offsets = [0, 9], sizes = [1, 1], strides = [1, 1]} : vector<1x128xf32> to vector<1x1xf32>
    %114 = vector.broadcast %113 : vector<1x1xf32> to vector<8x1xf32>
    %115 = arith.addf %112, %114 : vector<8x1xf32>
    %116 = math.absf %115 : vector<8x1xf32>
    %cst_34 = arith.constant 0.000000e+00 : f32
    %117 = vector.broadcast %cst_34 : f32 to vector<8x1xf32>
    %118 = arith.subf %117, %116 : vector<8x1xf32>
    %119 = math.exp %118 : vector<8x1xf32>
    %cst_35 = arith.constant 0.000000e+00 : f32
    %120 = vector.broadcast %cst_35 : f32 to vector<8x1xf32>
    %121 = arith.maximumf %115, %120 : vector<8x1xf32>
    %cst_36 = arith.constant 1.000000e+00 : f32
    %122 = vector.broadcast %cst_36 : f32 to vector<8x1xf32>
    %123 = arith.addf %122, %119 : vector<8x1xf32>
    %124 = math.log %123 : vector<8x1xf32>
    %125 = arith.addf %121, %124 : vector<8x1xf32>
    %cst_37 = arith.constant 0.000000e+00 : f32
    %126 = vector.broadcast %cst_37 : f32 to vector<8x1xf32>
    %127 = arith.cmpf oge, %115, %126 : vector<8x1xf32>
    %128 = tpu.reciprocal %119 : vector<8x1xf32> -> vector<8x1xf32>
    %129 = arith.select %127, %128, %119 : vector<8x1xi1>, vector<8x1xf32>
    %cst_38 = arith.constant 1.000000e+00 : f32
    %130 = vector.broadcast %cst_38 : f32 to vector<8x1xf32>
    %131 = arith.addf %130, %129 : vector<8x1xf32>
    %c1_i32 = arith.constant 1 : i32
    %132 = arith.cmpi slt, %arg0, %c1_i32 : i32
    %c1_i32_39 = arith.constant 1 : i32
    %133 = arith.subi %arg0, %c1_i32_39 : i32
    %134 = arith.select %132, %arg0, %133 : i32
    %c8_i32 = arith.constant 8 : i32
    %135 = arith.muli %134, %c8_i32 : i32
    %136 = tpu.iota {dimensions = array<i32: 0>} : vector<8x1xi32>
    %137 = vector.broadcast %135 : i32 to vector<8x1xi32>
    %138 = arith.addi %137, %136 : vector<8x1xi32>
    %c8_i32_40 = arith.constant 8 : i32
    %139 = vector.broadcast %c8_i32_40 : i32 to vector<8x1xi32>
    %140 = arith.cmpi slt, %138, %139 : vector<8x1xi32>
    %141 = arith.select %132, %125, %131 : vector<8x1xf32>
    %cst_41 = arith.constant 0.000000e+00 : f32
    %142 = vector.broadcast %cst_41 : f32 to vector<8x1xf32>
    %143 = arith.select %140, %141, %142 : vector<8x1xi1>, vector<8x1xf32>
    %144 = vector.shape_cast %143 : vector<8x1xf32> to vector<1x8x1xf32>
    %cst_42 = arith.constant dense<0.000000e+00> : vector<1xf32>
    %145 = vector.multi_reduction <add>, %144, %cst_42 [1, 2] : vector<1x8x1xf32> to vector<1xf32>
    %146 = vector.shape_cast %145 : vector<1xf32> to vector<1x1x1xf32>
    %147 = vector.extract %146[0, 0, 0] : f32 from vector<1x1x1xf32>
    %148 = vector.broadcast %147 : f32 to vector<1x1x128xf32>
    %c0_43 = arith.constant 0 : index
    %c0_44 = arith.constant 0 : index
    %c0_45 = arith.constant 0 : index
    %149 = vector.load %arg12[%c0_43, %c0_44, %c0_45] : memref<1x1x128xf32, #tpu.memory_space<vmem>>, vector<1x1x128xf32>
    tpu.vector_store %arg12[%c0_43, %c0_44, %c0_45], %148 {strides = array<i32>} : memref<1x1x128xf32, #tpu.memory_space<vmem>>, vector<1x1x128xf32>,
    return
  }
  func.func @transform_0(%arg0: i32) -> (i32, i32) {
    %c0_i32 = arith.constant 0 : i32
    %c0_i32_0 = arith.constant 0 : i32
    return %arg0, %c0_i32 : i32, i32
  }
  func.func @transform_1(%arg0: i32) -> (i32, i32) {
    %c0_i32 = arith.constant 0 : i32
    %c0_i32_0 = arith.constant 0 : i32
    %c0_i32_1 = arith.constant 0 : i32
    return %c0_i32, %c0_i32_0 : i32, i32
  }
  func.func @transform_2(%arg0: i32) -> (i32, i32) {
    %c0_i32 = arith.constant 0 : i32
    %c0_i32_0 = arith.constant 0 : i32
    %c0_i32_1 = arith.constant 0 : i32
    return %c0_i32, %c0_i32_0 : i32, i32
  }
  func.func @transform_3(%arg0: i32) -> (i32, i32) {
    %c0_i32 = arith.constant 0 : i32
    %c0_i32_0 = arith.constant 0 : i32
    %c0_i32_1 = arith.constant 0 : i32
    return %c0_i32, %c0_i32_0 : i32, i32
  }
  func.func @transform_4(%arg0: i32) -> (i32, i32) {
    %c0_i32 = arith.constant 0 : i32
    %c0_i32_0 = arith.constant 0 : i32
    %c0_i32_1 = arith.constant 0 : i32
    return %c0_i32, %c0_i32_0 : i32, i32
  }
  func.func @transform_5(%arg0: i32) -> (i32, i32) {
    %c0_i32 = arith.constant 0 : i32
    %c0_i32_0 = arith.constant 0 : i32
    %c0_i32_1 = arith.constant 0 : i32
    return %c0_i32, %c0_i32_0 : i32, i32
  }
  func.func @transform_6(%arg0: i32) -> (i32, i32) {
    %c0_i32 = arith.constant 0 : i32
    %c0_i32_0 = arith.constant 0 : i32
    %c0_i32_1 = arith.constant 0 : i32
    return %c0_i32, %c0_i32_0 : i32, i32
  }
  func.func @transform_7(%arg0: i32) -> (i32, i32) {
    %c0_i32 = arith.constant 0 : i32
    %c0_i32_0 = arith.constant 0 : i32
    %c0_i32_1 = arith.constant 0 : i32
    return %c0_i32, %c0_i32_0 : i32, i32
  }
  func.func @transform_8(%arg0: i32) -> (i32, i32) {
    %c0_i32 = arith.constant 0 : i32
    %c0_i32_0 = arith.constant 0 : i32
    %c0_i32_1 = arith.constant 0 : i32
    return %c0_i32, %c0_i32_0 : i32, i32
  }
  func.func @transform_9(%arg0: i32) -> (i32, i32) {
    %c0_i32 = arith.constant 0 : i32
    %c0_i32_0 = arith.constant 0 : i32
    %c0_i32_1 = arith.constant 0 : i32
    return %c0_i32, %c0_i32_0 : i32, i32
  }
  func.func @transform_10(%arg0: i32) -> (i32, i32) {
    %c0_i32 = arith.constant 0 : i32
    %c0_i32_0 = arith.constant 0 : i32
    %c0_i32_1 = arith.constant 0 : i32
    return %c0_i32, %c0_i32_0 : i32, i32
  }
  func.func @transform_11(%arg0: i32) -> (i32, i32, i32) {
    %c0_i32 = arith.constant 0 : i32
    %c0_i32_0 = arith.constant 0 : i32
    %c0_i32_1 = arith.constant 0 : i32
    return %arg0, %c0_i32, %c0_i32_0 : i32, i32, i32
  }
}

</mosaic_0001>

<llo_original>
// kernel: _mine_sums.1
$region0: #{_mine_sums.1}
  #allocation0 [shape = 'u32[]', space=smem, size = 0x4, offset = 0x4, fixed_abs, tag = 'smem constant byte address 0x4 - core index']
  #allocation1 [shape = 'u32[72,128]{1,0:T(1,128)}', space=vmem, size = 0x9000, scoped, tag = 'internal scratch']
  %s0 = inlined_call_operand.vmem [shape: f32[16,8], index: 0, kind: input, shape index: {}]
  %s1 = inlined_call_operand.vmem [shape: f32[1,128], index: 1, kind: input, shape index: {}]
  %s2 = inlined_call_operand.vmem [shape: f32[8,128], index: 2, kind: input, shape index: {}]
  %s3 = inlined_call_operand.vmem [shape: f32[1,128], index: 3, kind: input, shape index: {}]
  %s4 = inlined_call_operand.vmem [shape: f32[1,128], index: 4, kind: input, shape index: {}]
  %s5 = inlined_call_operand.vmem [shape: f32[1,128], index: 5, kind: input, shape index: {}]
  %s6 = inlined_call_operand.hbm [shape: bf16[128,128], index: 6, kind: input, shape index: {}]
  %s7 = inlined_call_operand.vmem [shape: f32[1,128], index: 7, kind: input, shape index: {}]
  %s8 = inlined_call_operand.vmem [shape: f32[1,128], index: 8, kind: input, shape index: {}]
  %s9 = inlined_call_operand.vmem [shape: f32[1,128], index: 9, kind: input, shape index: {}]
  %s10 = inlined_call_operand.vmem [shape: f32[1,128], index: 10, kind: input, shape index: {}]
  %s11 = inlined_call_operand.vmem [shape: f32[2,1,128], index: 11, kind: output, shape index: {}]
  %s12 = sld [smem:[#allocation0]]
  $region81: #{_mine_sums.1} parent=0
    _
  %s14 = ssub.s32 1, %s12
  %s15 = scalar_select 0, %s14, %s12
  $region1: #{_mine_sums.1} parent=0
    #allocation2 [shape = 'u8[32768]{0}', space=vmem, size = 0x8000, scoped, tag = 'input window, operand 6, single buffered']
    #allocation3 [shape = 's32[2]{0}', space=sflag, size = 0x8, scoped, tag = 'scoped memory for _mine_sums.1']
    %16 = vsyncpa [#allocation3], 0
    loop: start=0, step=1, limit=4
    $region2: #{_mine_sums.1} parent=1 // loop_pre_header
      _
    $region3: #{_mine_sums.1} parent=1 // loop_header
      %s18 = sphi 0, %s22
      %p19 = scmp.ge.s32.totalorder %s18, 4
      %s28 = sphi 0, %s30
      %s31 = sphi 0, %s28
      %s32 = sphi 0, %s31
      %s48 = sphi 0, %s32
      %s52 = sphi 0, %s52
      %s54 = sphi 0, %s52
      %s55 = sphi 0, %s54
      %s69 = sphi 0, %s55
      %s73 = sphi 0, %s73
      %s75 = sphi 0, %s73
      %s76 = sphi 0, %s75
      %s90 = sphi 0, %s76
      %s94 = sphi 0, %s94
      %s96 = sphi 0, %s94
      %s97 = sphi 0, %s96
      %s111 = sphi 0, %s97
      %s115 = sphi 0, %s115
      %s117 = sphi 0, %s115
      %s118 = sphi 0, %s117
      %s132 = sphi 0, %s118
      %s136 = sphi 0, %s136
      %s138 = sphi 0, %s136
      %s139 = sphi 0, %s138
      %s153 = sphi 0, %s139
      %s157 = sphi 0, %s157
      %s159 = sphi 0, %s157
      %s160 = sphi 0, %s159
      %s174 = sphi 0, %s160
      %s178 = sphi 0, %s178
      %s180 = sphi 0, %s178
      %s181 = sphi 0, %s180
      %s195 = sphi 0, %s181
      %s199 = sphi 0, %s199
      %s201 = sphi 0, %s199
      %s202 = sphi 0, %s201
      %s216 = sphi 0, %s202
      %s220 = sphi 0, %s220
      %s222 = sphi 0, %s220
      %s223 = sphi 0, %s222
      %s237 = sphi 0, %s223
      %s241 = sphi 0, %s241
      %s243 = sphi 0, %s241
      %s244 = sphi 0, %s243
      %s258 = sphi 0, %s244
      %s264 = sphi 0, %s266
      %s267 = sphi 0, %s264
      %s268 = sphi 0, %s267
      %s284 = sphi 0, %s268
    $region4: #{_mine_sums.1} parent=1 // loop_header_branch
      %21 = sbr.rel (%p19) target = $region8
    $region5: #{_mine_sums.1} parent=1 // loop_body
      %s23 = ssub.s32 %s18, 1
      %s24 = ssub.s32 %s18, 2
      %s25 = sadd.s32 %s18, 1
      %s26 = ssub.s32 %s18, %s25
      %p27 = scmp.eq.s32.totalorder %s26, 0
      %s29 = sadd.s32 %s28, 1
      %s30 = scalar_select %p27, %s28, %s29
      %p33 = pneg %p27
      %p34 = scmp.eq.s32.totalorder %s18, 1
      %p35 = por %p33, %p34
      %p36 = scmp.ne.s32.totalorder %s28, %s31
      %p37 = scmp.eq.s32.totalorder %s18, 0
      %p38 = por %p36, %p37
      %p39 = scmp.ne.s32.totalorder %s28, %s31
      %p40 = scmp.eq.s32.totalorder %s23, 1
      %p41 = por %p39, %p40
      %p42 = scmp.ne.s32.totalorder %s31, %s32
      %p43 = scmp.eq.s32.totalorder %s23, 0
      %p44 = por %p42, %p43
      %p45 = scmp.ne.s32.totalorder %s31, %s32
      %p46 = scmp.eq.s32.totalorder %s24, 1
      %p47 = por %p45, %p46
      %p49 = scmp.ne.s32.totalorder %s32, %s48
      %p50 = scmp.eq.s32.totalorder %s24, 0
      %p51 = por %p49, %p50
      %s53 = sadd.s32 %s52, 1
      %p56 = scmp.eq.s32.totalorder %s18, 1
      %p57 = scmp.ne.s32.totalorder %s52, %s54
      %p58 = scmp.eq.s32.totalorder %s18, 0
      %p59 = por %p57, %p58
      %p60 = scmp.ne.s32.totalorder %s52, %s54
      %p61 = scmp.eq.s32.totalorder %s23, 1
      %p62 = por %p60, %p61
      %p63 = scmp.ne.s32.totalorder %s54, %s55
      %p64 = scmp.eq.s32.totalorder %s23, 0
      %p65 = por %p63, %p64
      %p66 = scmp.ne.s32.totalorder %s54, %s55
      %p67 = scmp.eq.s32.totalorder %s24, 1
      %p68 = por %p66, %p67
      %p70 = scmp.ne.s32.totalorder %s55, %s69
      %p71 = scmp.eq.s32.totalorder %s24, 0
      %p72 = por %p70, %p71
      %s74 = sadd.s32 %s73, 1
      %p77 = scmp.eq.s32.totalorder %s18, 1
      %p78 = scmp.ne.s32.totalorder %s73, %s75
      %p79 = scmp.eq.s32.totalorder %s18, 0
      %p80 = por %p78, %p79
      %p81 = scmp.ne.s32.totalorder %s73, %s75
      %p82 = scmp.eq.s32.totalorder %s23, 1
      %p83 = por %p81, %p82
      %p84 = scmp.ne.s32.totalorder %s75, %s76
      %p85 = scmp.eq.s32.totalorder %s23, 0
      %p86 = por %p84, %p85
      %p87 = scmp.ne.s32.totalorder %s75, %s76
      %p88 = scmp.eq.s32.totalorder %s24, 1
      %p89 = por %p87, %p88
      %p91 = scmp.ne.s32.totalorder %s76, %s90
      %p92 = scmp.eq.s32.totalorder %s24, 0
      %p93 = por %p91, %p92
      %s95 = sadd.s32 %s94, 1
      %p98 = scmp.eq.s32.totalorder %s18, 1
      %p99 = scmp.ne.s32.totalorder %s94, %s96
      %p100 = scmp.eq.s32.totalorder %s18, 0
      %p101 = por %p99, %p100
      %p102 = scmp.ne.s32.totalorder %s94, %s96
      %p103 = scmp.eq.s32.totalorder %s23, 1
      %p104 = por %p102, %p103
      %p105 = scmp.ne.s32.totalorder %s96, %s97
      %p106 = scmp.eq.s32.totalorder %s23, 0
      %p107 = por %p105, %p106
      %p108 = scmp.ne.s32.totalorder %s96, %s97
      %p109 = scmp.eq.s32.totalorder %s24, 1
      %p110 = por %p108, %p109
      %p112 = scmp.ne.s32.totalorder %s97, %s111
      %p113 = scmp.eq.s32.totalorder %s24, 0
      %p114 = por %p112, %p113
      %s116 = sadd.s32 %s115, 1
      %p119 = scmp.eq.s32.totalorder %s18, 1
      %p120 = scmp.ne.s32.totalorder %s115, %s117
      %p121 = scmp.eq.s32.totalorder %s18, 0
      %p122 = por %p120, %p121
      %p123 = scmp.ne.s32.totalorder %s115, %s117
      %p124 = scmp.eq.s32.totalorder %s23, 1
      %p125 = por %p123, %p124
      %p126 = scmp.ne.s32.totalorder %s117, %s118
      %p127 = scmp.eq.s32.totalorder %s23, 0
      %p128 = por %p126, %p127
      %p129 = scmp.ne.s32.totalorder %s117, %s118
      %p130 = scmp.eq.s32.totalorder %s24, 1
      %p131 = por %p129, %p130
      %p133 = scmp.ne.s32.totalorder %s118, %s132
      %p134 = scmp.eq.s32.totalorder %s24, 0
      %p135 = por %p133, %p134
      %s137 = sadd.s32 %s136, 1
      %p140 = scmp.eq.s32.totalorder %s18, 1
      %p141 = scmp.ne.s32.totalorder %s136, %s138
      %p142 = scmp.eq.s32.totalorder %s18, 0
      %p143 = por %p141, %p142
      %p144 = scmp.ne.s32.totalorder %s136, %s138
      %p145 = scmp.eq.s32.totalorder %s23, 1
      %p146 = por %p144, %p145
      %p147 = scmp.ne.s32.totalorder %s138, %s139
      %p148 = scmp.eq.s32.totalorder %s23, 0
      %p149 = por %p147, %p148
      %p150 = scmp.ne.s32.totalorder %s138, %s139
      %p151 = scmp.eq.s32.totalorder %s24, 1
      %p152 = por %p150, %p151
      %p154 = scmp.ne.s32.totalorder %s139, %s153
      %p155 = scmp.eq.s32.totalorder %s24, 0
      %p156 = por %p154, %p155
      %s158 = sadd.s32 %s157, 1
      %p161 = scmp.eq.s32.totalorder %s18, 1
      %p162 = scmp.ne.s32.totalorder %s157, %s159
      %p163 = scmp.eq.s32.totalorder %s18, 0
      %p164 = por %p162, %p163
      %p165 = scmp.ne.s32.totalorder %s157, %s159
      %p166 = scmp.eq.s32.totalorder %s23, 1
      %p167 = por %p165, %p166
      %p168 = scmp.ne.s32.totalorder %s159, %s160
      %p169 = scmp.eq.s32.totalorder %s23, 0
      %p170 = por %p168, %p169
      %p171 = scmp.ne.s32.totalorder %s159, %s160
      %p172 = scmp.eq.s32.totalorder %s24, 1
      %p173 = por %p171, %p172
      %p175 = scmp.ne.s32.totalorder %s160, %s174
      %p176 = scmp.eq.s32.totalorder %s24, 0
      %p177 = por %p175, %p176
      %s179 = sadd.s32 %s178, 1
      %p182 = scmp.eq.s32.totalorder %s18, 1
      %p183 = scmp.ne.s32.totalorder %s178, %s180
      %p184 = scmp.eq.s32.totalorder %s18, 0
      %p185 = por %p183, %p184
      %p186 = scmp.ne.s32.totalorder %s178, %s180
      %p187 = scmp.eq.s32.totalorder %s23, 1
      %p188 = por %p186, %p187
      %p189 = scmp.ne.s32.totalorder %s180, %s181
      %p190 = scmp.eq.s32.totalorder %s23, 0
      %p191 = por %p189, %p190
      %p192 = scmp.ne.s32.totalorder %s180, %s181
      %p193 = scmp.eq.s32.totalorder %s24, 1
      %p194 = por %p192, %p193
      %p196 = scmp.ne.s32.totalorder %s181, %s195
      %p197 = scmp.eq.s32.totalorder %s24, 0
      %p198 = por %p196, %p197
      %s200 = sadd.s32 %s199, 1
      %p203 = scmp.eq.s32.totalorder %s18, 1
      %p204 = scmp.ne.s32.totalorder %s199, %s201
      %p205 = scmp.eq.s32.totalorder %s18, 0
      %p206 = por %p204, %p205
      %p207 = scmp.ne.s32.totalorder %s199, %s201
      %p208 = scmp.eq.s32.totalorder %s23, 1
      %p209 = por %p207, %p208
      %p210 = scmp.ne.s32.totalorder %s201, %s202
      %p211 = scmp.eq.s32.totalorder %s23, 0
      %p212 = por %p210, %p211
      %p213 = scmp.ne.s32.totalorder %s201, %s202
      %p214 = scmp.eq.s32.totalorder %s24, 1
      %p215 = por %p213, %p214
      %p217 = scmp.ne.s32.totalorder %s202, %s216
      %p218 = scmp.eq.s32.totalorder %s24, 0
      %p219 = por %p217, %p218
      %s221 = sadd.s32 %s220, 1
      %p224 = scmp.eq.s32.totalorder %s18, 1
      %p225 = scmp.ne.s32.totalorder %s220, %s222
      %p226 = scmp.eq.s32.totalorder %s18, 0
      %p227 = por %p225, %p226
      %p228 = scmp.ne.s32.totalorder %s220, %s222
      %p229 = scmp.eq.s32.totalorder %s23, 1
      %p230 = por %p228, %p229
      %p231 = scmp.ne.s32.totalorder %s222, %s223
      %p232 = scmp.eq.s32.totalorder %s23, 0
      %p233 = por %p231, %p232
      %p234 = scmp.ne.s32.totalorder %s222, %s223
      %p235 = scmp.eq.s32.totalorder %s24, 1
      %p236 = por %p234, %p235
      %p238 = scmp.ne.s32.totalorder %s223, %s237
      %p239 = scmp.eq.s32.totalorder %s24, 0
      %p240 = por %p238, %p239
      %s242 = sadd.s32 %s241, 1
      %p245 = scmp.eq.s32.totalorder %s18, 1
      %p246 = scmp.ne.s32.totalorder %s241, %s243
      %p247 = scmp.eq.s32.totalorder %s18, 0
      %p248 = por %p246, %p247
      %p249 = scmp.ne.s32.totalorder %s241, %s243
      %p250 = scmp.eq.s32.totalorder %s23, 1
      %p251 = por %p249, %p250
      %p252 = scmp.ne.s32.totalorder %s243, %s244
      %p253 = scmp.eq.s32.totalorder %s23, 0
      %p254 = por %p252, %p253
      %p255 = scmp.ne.s32.totalorder %s243, %s244
      %p256 = scmp.eq.s32.totalorder %s24, 1
      %p257 = por %p255, %p256
      %p259 = scmp.ne.s32.totalorder %s244, %s258
      %p260 = scmp.eq.s32.totalorder %s24, 0
      %p261 = por %p259, %p260
      %s262 = ssub.s32 %s18, %s25
      %p263 = scmp.eq.s32.totalorder %s262, 0
      %s265 = sadd.s32 %s264, 1
      %s266 = scalar_select %p263, %s264, %s265
      %p269 = pneg %p263
      %p270 = scmp.eq.s32.totalorder %s18, 1
      %p271 = por %p269, %p270
      %p272 = scmp.ne.s32.totalorder %s264, %s267
      %p273 = scmp.eq.s32.totalorder %s18, 0
      %p274 = por %p272, %p273
      %p275 = scmp.ne.s32.totalorder %s264, %s267
      %p276 = scmp.eq.s32.totalorder %s23, 1
      %p277 = por %p275, %p276
      %p278 = scmp.ne.s32.totalorder %s267, %s268
      %p279 = scmp.eq.s32.totalorder %s23, 0
      %p280 = por %p278, %p279
      %p281 = scmp.ne.s32.totalorder %s267, %s268
      %p282 = scmp.eq.s32.totalorder %s24, 1
      %p283 = por %p281, %p282
      %p285 = scmp.ne.s32.totalorder %s268, %s284
      %p286 = scmp.eq.s32.totalorder %s24, 0
      %p287 = por %p285, %p286
      %p288 = scmp.le.s32.totalorder 1, %s18
      %p289 = scmp.lt.s32.totalorder %s18, 3
      %p290 = pnand %p288, %p289
      %p291 = pneg %p290
      // Predicated region
      $region9: #{_mine_sums.1} parent=5 // pred_check
        _
      $region10: #{_mine_sums.1} parent=5 // pred_check_branch
        %293 = sbr.rel (%p290) target = $region12
      $region11: #{_mine_sums.1} parent=5 // pred_region
        %s294 = ssub.s32 %s18, 1
        // Predicated region
        $region13: #{_mine_sums.1} parent=11 // pred_check
          %p295 = pneg %p65
        $region14: #{_mine_sums.1} parent=11 // pred_check_branch
          %297 = sbr.rel (%p295) target = $region16
        $region15: #{_mine_sums.1} parent=11 // pred_region
          _
        $region16: #{_mine_sums.1} parent=11 // pred_fallthru
          _
        // Predicated region
        $region17: #{_mine_sums.1} parent=11 // pred_check
          %p298 = pneg %p86
        $region18: #{_mine_sums.1} parent=11 // pred_check_branch
          %300 = sbr.rel (%p298) target = $region20
        $region19: #{_mine_sums.1} parent=11 // pred_region
          _
        $region20: #{_mine_sums.1} parent=11 // pred_fallthru
          _
        // Predicated region
        $region21: #{_mine_sums.1} parent=11 // pred_check
          %p301 = pneg %p107
        $region22: #{_mine_sums.1} parent=11 // pred_check_branch
          %303 = sbr.rel (%p301) target = $region24
        $region23: #{_mine_sums.1} parent=11 // pred_region
          _
        $region24: #{_mine_sums.1} parent=11 // pred_fallthru
          _
        // Predicated region
        $region25: #{_mine_sums.1} parent=11 // pred_check
          %p304 = pneg %p128
        $region26: #{_mine_sums.1} parent=11 // pred_check_branch
          %306 = sbr.rel (%p304) target = $region28
        $region27: #{_mine_sums.1} parent=11 // pred_region
          _
        $region28: #{_mine_sums.1} parent=11 // pred_fallthru
          _
        // Predicated region
        $region29: #{_mine_sums.1} parent=11 // pred_check
          %p307 = pneg %p149
        $region30: #{_mine_sums.1} parent=11 // pred_check_branch
          %309 = sbr.rel (%p307) target = $region32
        $region31: #{_mine_sums.1} parent=11 // pred_region
          _
        $region32: #{_mine_sums.1} parent=11 // pred_fallthru
          _
        // Predicated region
        $region33: #{_mine_sums.1} parent=11 // pred_check
          %p310 = pneg %p170
        $region34: #{_mine_sums.1} parent=11 // pred_check_branch
          %312 = sbr.rel (%p310) target = $region36
        $region35: #{_mine_sums.1} parent=11 // pred_region
          %314 = vsyncadd [#allocation3], 0
          %s315 = sshll.u32 %s6, 4
          %s316 = int_to_ptr.hbm [resolvable:$true] %s315
          %s317 = sshll.u32 [#allocation2], 4
          %s318 = int_to_ptr.vmem [resolvable:$true] %s317
          %323 = dma.hbm_to_vmem [thread:$0]  %s316, 1024, %s318, [#allocation3], 64, 64, 4
        $region36: #{_mine_sums.1} parent=11 // pred_fallthru
          _
        // Predicated region
        $region37: #{_mine_sums.1} parent=11 // pred_check
          %p324 = pneg %p191
        $region38: #{_mine_sums.1} parent=11 // pred_check_branch
          %326 = sbr.rel (%p324) target = $region40
        $region39: #{_mine_sums.1} parent=11 // pred_region
          _
        $region40: #{_mine_sums.1} parent=11 // pred_fallthru
          _
        // Predicated region
        $region41: #{_mine_sums.1} parent=11 // pred_check
          %p327 = pneg %p212
        $region42: #{_mine_sums.1} parent=11 // pred_check_branch
          %329 = sbr.rel (%p327) target = $region44
        $region43: #{_mine_sums.1} parent=11 // pred_region
          _
        $region44: #{_mine_sums.1} parent=11 // pred_fallthru
          _
        // Predicated region
        $region45: #{_mine_sums.1} parent=11 // pred_check
          %p330 = pneg %p233
        $region46: #{_mine_sums.1} parent=11 // pred_check_branch
          %332 = sbr.rel (%p330) target = $region48
        $region47: #{_mine_sums.1} parent=11 // pred_region
          _
        $region48: #{_mine_sums.1} parent=11 // pred_fallthru
          _
        // Predicated region
        $region49: #{_mine_sums.1} parent=11 // pred_check
          %p333 = pneg %p254
        $region50: #{_mine_sums.1} parent=11 // pred_check_branch
          %335 = sbr.rel (%p333) target = $region52
        $region51: #{_mine_sums.1} parent=11 // pred_region
          _
        $region52: #{_mine_sums.1} parent=11 // pred_fallthru
          _
      $region12: #{_mine_sums.1} parent=5 // pred_fallthru
        _
      %p336 = scmp.lt.s32.totalorder %s18, 2
      // Predicated region
      $region53: #{_mine_sums.1} parent=5 // pred_check
        %p337 = pneg %p336
      $region54: #{_mine_sums.1} parent=5 // pred_check_branch
        %339 = sbr.rel (%p337) target = $region56
      $region55: #{_mine_sums.1} parent=5 // pred_region
        // Predicated region
        $region57: #{_mine_sums.1} parent=55 // pred_check
          %p340 = pneg %p38
        $region58: #{_mine_sums.1} parent=55 // pred_check_branch
          %342 = sbr.rel (%p340) target = $region60
        $region59: #{_mine_sums.1} parent=55 // pred_region
          %p343 = scmp.lt.s32.totalorder %s18, 1
          %s344 = scalar_select %p343, %s18, 1
          %s345 = smul.addr %s344, 8
          %s346 = scalar_lea.vmem %s0, %s345
        $region60: #{_mine_sums.1} parent=55 // pred_fallthru
          _
      $region56: #{_mine_sums.1} parent=5 // pred_fallthru
        _
      %p347 = scmp.le.s32.totalorder 1, %s18
      %p348 = scmp.lt.s32.totalorder %s18, 3
      %p349 = pnand %p347, %p348
      %p350 = pneg %p349
      // Predicated region
      $region61: #{_mine_sums.1} parent=5 // pred_check
        _
      $region62: #{_mine_sums.1} parent=5 // pred_check_branch
        %352 = sbr.rel (%p349) target = $region64
      $region63: #{_mine_sums.1} parent=5 // pred_region
        %s353 = ssub.s32 %s18, 1
        // Predicated region
        $region65: #{_mine_sums.1} parent=63 // pred_check
          %p354 = pneg %p170
        $region66: #{_mine_sums.1} parent=63 // pred_check_branch
          %356 = sbr.rel (%p354) target = $region68
        $region67: #{_mine_sums.1} parent=63 // pred_region
          %358 = dma.done [#allocation3], 1024
        $region68: #{_mine_sums.1} parent=63 // pred_fallthru
          _
        %p359 = scmp.lt.s32.totalorder %s23, 1
        %s360 = scalar_select %p359, %s23, 1
        %s361 = smul.addr %s360, 8
        %s362 = scalar_lea.vmem %s0, %s361
        %p363 = pneg %p44
        %p364 = pneg %p41
        %p365 = pneg %p65
        %p366 = pneg %p62
        %p367 = pneg %p86
        %p368 = pneg %p83
        %p369 = pneg %p107
        %p370 = pneg %p104
        %p371 = pneg %p128
        %p372 = pneg %p125
        %p373 = pneg %p149
        %p374 = pneg %p146
        %p375 = pneg %p170
        %p376 = pneg %p167
        %p377 = pneg %p191
        %p378 = pneg %p188
        %p379 = pneg %p212
        %p380 = pneg %p209
        %p381 = pneg %p233
        %p382 = pneg %p230
        %p383 = pneg %p254
        %p384 = pneg %p251
        %p385 = pneg %p280
        %p386 = pneg %p277
        %p387 = scmp.lt.s32.totalorder %s23, 1
        %s388 = scalar_select %p387, %s23, 1
        %s389 = scalar_lea.vmem %s11, %s388
        %p390 = scmp.lt.s32.totalorder %s23, 1
        %s391 = scalar_select %p390, %s23, 1
        %s392 = smul.addr %s391, 8
        %s393 = scalar_lea.vmem %s0, %s392
        %p394 = scmp.lt.s32.totalorder %s23, 1
        %s395 = scalar_select %p394, %s23, 1
        %s396 = scalar_lea.vmem %s11, %s395
        %v397 = vld [vmem:[%s393] sm:$0xff]
        %v398 = vld [vmem:[%s2] sm:$0x1]
        %400 = vset.pattern.permute.xlu0 0
        %401 = vperm.xlu0 %400, %v397
        %v402 = vpop.permute.xlu0 %401
        %v404 = vperm.slane %v398, 0
        %v405 = vmul.f32 %v402, %v404
        %v406 = vld [vmem:[%s2 + $0x1] sm:$0x1]
        %407 = vset.pattern.permute.xlu0 1
        %408 = vperm.xlu0 %407, %v397
        %v409 = vpop.permute.xlu0 %408
        %v411 = vperm.slane %v406, 0
        %v412 = vmul.f32 %v409, %v411
        %v413 = vadd.f32 %v405, %v412
        %v414 = vld [vmem:[%s3] sm:$0x1]
        %v416 = vperm.slane %v414, 0
        %v418 = vadd.f32 %v413, %v416
        %v419 = vld [vmem:[%s1] sm:$0x1]
        %v421 = vperm.slane %v419, 0
        %v423 = vmul.f32 %v397, %v421
        %425 = vrot.lane.b32.xlu0 %v423, 127
        %v426 = vpop.permute.xlu0 %425
        %v428 = vadd.f32 %v423, %v426
        %429 = vrot.lane.b32.xlu0 %v421, 126
        %v430 = vpop.permute.xlu0 %429
        %v432 = vadd.f32 %v428, %v430
        %v433 = vmul.f32 %v432, 0.02
        %v434 = vmul.f32 %v397, %v397
        %435 = vrot.lane.b32.xlu0 %v421, 125
        %v436 = vpop.permute.xlu0 %435
        %v438 = vmul.f32 %v434, %v436
        %440 = vrot.lane.b32.xlu0 %v438, 127
        %v441 = vpop.permute.xlu0 %440
        %v443 = vadd.f32 %v438, %v441
        %v444 = vmul.f32 %v397, 2.0
        %445 = vrot.lane.b32.xlu0 %v397, 127
        %v446 = vpop.permute.xlu0 %445
        %v448 = vmul.f32 %v444, %v446
        %449 = vrot.lane.b32.xlu0 %v421, 123
        %v450 = vpop.permute.xlu0 %449
        %v452 = vmul.f32 %v448, %v450
        %v453 = vadd.f32 %v443, %v452
        %454 = vrot.lane.b32.xlu0 %v421, 122
        %v455 = vpop.permute.xlu0 %454
        %v457 = vmul.f32 %v444, %v455
        %v458 = vadd.f32 %v453, %v457
        %460 = vrot.lane.b32.xlu0 %v457, 127
        %v461 = vpop.permute.xlu0 %460
        %v463 = vadd.f32 %v458, %v461
        %464 = vrot.lane.b32.xlu0 %v421, 120
        %v465 = vpop.permute.xlu0 %464
        %v467 = vadd.f32 %v463, %v465
        %v468 = vmul.f32 %v467, 0.02
        %v469 = vmul.f32 %v433, %v433
        %v470 = vsub.f32 %v468, %v469
        %472 = vset.pattern.permute.xlu0 0
        %473 = vperm.xlu0 %472, %v433
        %v474 = vpop.permute.xlu0 %473
        %v476 = vsub.f32 %v418, %v474
        %v477 = vadd.f32 %v470, 1e-05
        %v478 = vrsqrt.pop %v477
        %v479 = vmul.f32 %v478, %v477
        %v480 = vmul.f32 %v479, %v478
        %v481 = vmul.f32 0.5, %v480
        %v482 = vsub.f32 1.5, %v481
        %v483 = vmul.f32 %v478, %v482
        %vm484 = vweird.f32 %v477
        %vm485 = vweird.f32 %v478
        %vm486 = vmor %vm484, %vm485
        %v487 = vsel %vm486, %v478, %v483
        %489 = vset.pattern.permute.xlu0 0
        %490 = vperm.xlu0 %489, %v487
        %v491 = vpop.permute.xlu0 %490
        %v493 = vmul.f32 %v476, %v491
        %v494 = vld [vmem:[%s4] sm:$0x1]
        %v496 = vperm.slane %v494, 0
        %v498 = vmul.f32 %v493, %v496
        %v499 = vld [vmem:[%s5] sm:$0x1]
        %v501 = vperm.slane %v499, 0
        %v503 = vadd.f32 %v498, %v501
        %v504 = vtanh.pop %v503
        %v505 = vpack.c.bf16 %v504, %v504
        %v506 = vld [vmem:[#allocation2] sm:$0xf]
        %v507 = vld [vmem:[#allocation2 + $0x4] sm:$0xf]
        %v508 = vld [vmem:[#allocation2 + $0x8] sm:$0xf]
        %v509 = vld [vmem:[#allocation2 + $0xc] sm:$0xf]
        %v510 = vld [vmem:[#allocation2 + $0x10] sm:$0xf]
        %v511 = vld [vmem:[#allocation2 + $0x14] sm:$0xf]
        %v512 = vld [vmem:[#allocation2 + $0x18] sm:$0xf]
        %v513 = vld [vmem:[#allocation2 + $0x1c] sm:$0xf]
        %v514 = vld [vmem:[#allocation2 + $0x20] sm:$0xf]
        %v515 = vld [vmem:[#allocation2 + $0x24] sm:$0xf]
        %v516 = vld [vmem:[#allocation2 + $0x28] sm:$0xf]
        %v517 = vld [vmem:[#allocation2 + $0x2c] sm:$0xf]
        %v518 = vld [vmem:[#allocation2 + $0x30] sm:$0xf]
        %v519 = vld [vmem:[#allocation2 + $0x34] sm:$0xf]
        %v520 = vld [vmem:[#allocation2 + $0x38] sm:$0xf]
        %v521 = vld [vmem:[#allocation2 + $0x3c] sm:$0xf]
        %v522 = vld [vmem:[%s7] sm:$0x1]
        %v524 = vperm.slane %v522, 0
        %v542 = vunpack.c.l.b16 %v506
        %v543 = vunpack.c.l.b16 %v507
        %v544 = vunpack.c.l.b16 %v508
        %v545 = vunpack.c.l.b16 %v509
        %v546 = vunpack.c.l.b16 %v510
        %v547 = vunpack.c.l.b16 %v511
        %v548 = vunpack.c.l.b16 %v512
        %v549 = vunpack.c.l.b16 %v513
        %v550 = vunpack.c.l.b16 %v514
        %v551 = vunpack.c.l.b16 %v515
        %v552 = vunpack.c.l.b16 %v516
        %v553 = vunpack.c.l.b16 %v517
        %v554 = vunpack.c.l.b16 %v518
        %v555 = vunpack.c.l.b16 %v519
        %v556 = vunpack.c.l.b16 %v520
        %v557 = vunpack.c.l.b16 %v521
        %v558 = vpack.c.b16 %v543, %v542
        %v559 = vpack.c.b16 %v545, %v544
        %v560 = vpack.c.b16 %v547, %v546
        %v561 = vpack.c.b16 %v549, %v548
        %v562 = vpack.c.b16 %v551, %v550
        %v563 = vpack.c.b16 %v553, %v552
        %v564 = vpack.c.b16 %v555, %v554
        %v565 = vpack.c.b16 %v557, %v556
        %574 = vmatpush.bf16.msra.mxu0 %v565
        %575 = vmatpush.bf16.msra.mxu0 %v564
        %576 = vmatpush.bf16.msra.mxu0 %v563
        %577 = vmatpush.bf16.msra.mxu0 %v562
        %578 = vmatpush.bf16.msra.mxu0 %v561
        %579 = vmatpush.bf16.msra.mxu0 %v560
        %580 = vmatpush.bf16.msra.mxu0 %v559
        %581 = vmatpush.bf16.msra.mxu0 %v558
        %582 = vmatmul.bf16.gmra.mxu0 %v505
        %v583 = vpop.f32.mrf.mxu0
        %v584 = vadd.f32 %v524, %v583
        %v585 = vpop.f32.mrf.mxu0
        %586 = vdwg.mxu0
        %587 = vadd.xlane.f32.xlu0 %v584
        %v588 = vpop.xlane.xlu0 %587
        %v589 = vmul.f32 %v588, 0.02
        %v590 = vmul.f32 %v584, %v584
        %591 = vadd.xlane.f32.xlu0 %v590
        %v592 = vpop.xlane.xlu0 %591
        %v593 = vmul.f32 %v592, 0.02
        %v594 = vmul.f32 %v589, %v589
        %v595 = vsub.f32 %v593, %v594
        %v596 = vsub.f32 %v584, %v589
        %v597 = vadd.f32 %v595, 1e-05
        %v598 = vrsqrt.pop %v597
        %v599 = vmul.f32 %v598, %v597
        %v600 = vmul.f32 %v599, %v598
        %v601 = vmul.f32 0.5, %v600
        %v602 = vsub.f32 1.5, %v601
        %v603 = vmul.f32 %v598, %v602
        %vm604 = vweird.f32 %v597
        %vm605 = vweird.f32 %v598
        %vm606 = vmor %vm604, %vm605
        %v607 = vsel %vm606, %v598, %v603
        %v608 = vmul.f32 %v596, %v607
        %v609 = vld [vmem:[%s8] sm:$0x1]
        %v611 = vperm.slane %v609, 0
        %v613 = vmul.f32 %v608, %v611
        %v614 = vld [vmem:[%s9] sm:$0x1]
        %v616 = vperm.slane %v614, 0
        %v618 = vadd.f32 %v613, %v616
        %v619 = vtanh.pop %v618
        %v620 = vld [vmem:[%s10] sm:$0x1]
        %v622 = vperm.slane %v620, 0
        %v624 = vmul.f32 %v619, %v622
        %625 = vadd.xlane.f32.xlu0 %v624
        %v626 = vpop.xlane.xlu0 %625
        %v627 = vadd.f32 %v626, %v421
        %v628 = vand.u32 2147483647, %v627
        %v629 = vsub.f32 0.0, %v628
        %v630 = vmul.f32 %v629, 1.442695
        %v631 = vpow.pop %v630
        %v632 = vmax.f32 %v627, 0.0
        %v633 = vadd.f32 %v631, 1.0
        %v634 = vlog2.pop %v633
        %v635 = vmul.f32 %v634, 0.6931472
        %v636 = vadd.f32 %v632, %v635
        %vm637 = vcmp.ge.f32.partialorder %v627, 0.0
        %v638 = vrcp.pop %v631
        %v639 = vmul.f32 %v631, %v638
        %v640 = vsub.f32 1.0, %v639
        %v641 = vmul.f32 %v638, %v640
        %v642 = vadd.f32 %v638, %v641
        %vm643 = vweird.f32 %v631
        %vm644 = vweird.f32 %v638
        %vm645 = vmor %vm643, %vm644
        %v646 = vsel %vm645, %v638, %v642
        %v647 = vand.u32 2147483647, %v631
        %vm648 = vcmp.eq.f32.partialorder %v647, 8.507059e+37
        %v649 = vand.u32 %v631, 2147483648
        %v650 = vor.u32 1.1754944e-38, %v649
        %v651 = vsel %vm648, %v650, %v646
        %v652 = vsel %vm637, %v651, %v631
        %v653 = vadd.f32 %v652, 1.0
        %p654 = scmp.lt.s32.totalorder %s23, 1
        %s655 = ssub.s32 %s23, 1
        %s656 = scalar_select %p654, %s23, %s655
        %s657 = smul.u32 %s656, 8
        %v658 = vlaneseq
        %v659 = vshrl.u32 %v658, 7
        %v660 = vstv %s657
        %v661 = vadd.s32 %v660, %v659
        %vm662 = vcmp.lt.s32.totalorder %v661, 8
        %s663 = scalar_select %p654, 1, 0
        %v664 = vstv %s663
        %vm665 = vcmp.eq.s32.totalorder %v664, 1
        %v666 = vsel %vm665, %v636, %v653
        %v667 = vsel %vm662, %v666, 0.0
        %669 = vrot.lane.b32.xlu0 %v667, 119
        %v670 = vpop.permute.xlu0 %669
        %vm672 = vcmask 7168
        %v673 = vsel %vm672, %v670, 0.0
        %674 = vadd.xlane.f32.xlu0 %v673
        %v675 = vpop.xlane.xlu0 %674
        %v676 = vrot.slane %v675, 4
        %v677 = vadd.f32 %v675, %v676
        %v678 = vrot.slane %v677, 2
        %v679 = vadd.f32 %v677, %v678
        %v680 = vrot.slane %v679, 1
        %v681 = vadd.f32 %v679, %v680
        %s682 = vtos %v681
        %v683 = vstv %s682
        %684 = vst [vmem:[%s396] sm:$0x1] %v683
        %p685 = scmp.lt.s32.totalorder %s23, 1
        %s686 = scalar_select %p685, %s23, 1
        %s687 = scalar_lea.vmem %s11, %s686
        // Predicated region
        $region69: #{_mine_sums.1} parent=63 // pred_check
          %p688 = pneg %p277
        $region70: #{_mine_sums.1} parent=63 // pred_check_branch
          %690 = sbr.rel (%p688) target = $region72
        $region71: #{_mine_sums.1} parent=63 // pred_region
          _
        $region72: #{_mine_sums.1} parent=63 // pred_fallthru
          _
      $region64: #{_mine_sums.1} parent=5 // pred_fallthru
        _
      %p691 = scmp.le.s32.totalorder 2, %s18
      // Predicated region
      $region73: #{_mine_sums.1} parent=5 // pred_check
        %p692 = pneg %p691
      $region74: #{_mine_sums.1} parent=5 // pred_check_branch
        %694 = sbr.rel (%p692) target = $region76
      $region75: #{_mine_sums.1} parent=5 // pred_region
        %s695 = ssub.s32 %s18, 2
        // Predicated region
        $region77: #{_mine_sums.1} parent=75 // pred_check
          %p696 = pneg %p283
        $region78: #{_mine_sums.1} parent=75 // pred_check_branch
          %698 = sbr.rel (%p696) target = $region80
        $region79: #{_mine_sums.1} parent=75 // pred_region
          %p699 = scmp.lt.s32.totalorder %s24, 1
          %s700 = scalar_select %p699, %s24, 1
          %s701 = scalar_lea.vmem %s11, %s700
        $region80: #{_mine_sums.1} parent=75 // pred_fallthru
          _
      $region76: #{_mine_sums.1} parent=5 // pred_fallthru
        _
    $region6: #{_mine_sums.1} parent=1 // loop_footer
      %s22 = sadd.s32 1, %s18
    $region7: #{_mine_sums.1} parent=1 // loop_footer_branch
      %17 = sbr.rel target = $region3
    $region8: #{_mine_sums.1} parent=1 // loop_exit
      _
    %702 = vsyncpa [#allocation3], 1
    %s703 = scalar_lea.sflag [#allocation3], 1
    %704 = vsyncpa %s703, 1

</llo_original>
